<compile_context>
chip_gen: v5e
topology: v5e:2x2
jax: 0.10.0
libtpu: 0.0.40
codegen_flags: <defaults>
</compile_context>

<pallas_src>
import functools

import jax
import jax.numpy as jnp
from jax.experimental import pallas as pl
from jax.experimental.pallas import tpu as pltpu


def _round_up(x: int, m: int) -> int:
    return ((x + m - 1) // m) * m


def _pick_c_tile(c_pad: int, requested: int) -> int:
    """Largest multiple of 128 that divides c_pad and is <= requested."""
    requested = max(128, min(int(requested), c_pad))
    m = c_pad // 128
    best = 1
    for t in range(1, m + 1):
        if m % t == 0 and 128 * t <= requested:
            best = t
    return 128 * best


def _proxy_anchor_kernel(emb_ref, prox_ref, inv_ref, lab_ref,
                         logpos_ref, logneg_ref, present_ref,
                         *, margin: float, alpha: float, n_classes: int,
                         c_tile: int):
    c = pl.program_id(0)

    # cos = emb @ normalize(prox).T with the normalization applied on the
    # OUTPUT side via the precomputed (1, Ct) f32 inverse norms. bf16 MXU
    # operands, f32 accumulation; the shared D axis is contracted straight
    # from the (C, D) layout -> no transpose of the proxy tile.
    cos = jax.lax.dot_general(
        emb_ref[...], prox_ref[...],
        dimension_numbers=(((1,), (1,)), ((), ())),
        preferred_element_type=jnp.float32) * inv_ref[...]        # (Bp, Ct)

    labels = lab_ref[...]                                         # (Bp, 1) int32
    # (1, Ct) iota; the compares broadcast against the (Bp, 1) labels column,
    # so no (Bp, Ct) int32 tile is materialized.
    col_ids = c * c_tile + jax.lax.broadcasted_iota(jnp.int32, (1, c_tile), 1)
    pos_mask = col_ids == labels                                  # (Bp, Ct) bool
    # padded rows carry label -1, padded classes have col_id >= n_classes:
    # both are excluded from the negative term (and can never be positive).
    valid = jnp.logical_and(col_ids < n_classes, labels >= 0)     # (Bp, Ct) bool
    pos_w = pos_mask.astype(jnp.float32)
    neg_w = jnp.logical_and(valid, jnp.logical_not(pos_mask)).astype(jnp.float32)

    # Single exp per element:
    #   positive: exp(-alpha*(cos - margin)) = exp(alpha*margin - alpha*cos)
    #   negative: exp( alpha*(cos + margin)) = exp(alpha*margin + alpha*cos)
    sign = 1.0 - 2.0 * pos_w
    e = jnp.exp(alpha * margin + sign * (alpha * cos))            # (Bp, Ct)

    sum_pos = jnp.sum(pos_w * e, axis=0, keepdims=True)           # (1, Ct)
    sum_neg = jnp.sum(neg_w * e, axis=0, keepdims=True)           # (1, Ct)

    # Absent / padded classes contribute log(1 + 0) = 0 downstream.
    # e is strictly positive and cannot underflow for |cos| <= 1 with
    # alpha*(1+margin) well inside f32 range, so sum_pos > 0 <=> class present.
    logpos_ref[...] = jnp.log(1.0 + sum_pos)
    logneg_ref[...] = jnp.log(1.0 + sum_neg)
    present_ref[...] = (sum_pos > 0.0).astype(jnp.float32)


def proxy_anchor_loss(embeddings, proxies, labels, *, n_classes: int,
                      margin: float, alpha: float, c_tile: int = 1024):
    """Returns (loss, 0) matching ProxyAnchorLoss.forward."""
    B, D = embeddings.shape
    C, D2 = proxies.shape
    assert D2 == D and C == n_classes

    # Alignment: 16 batch rows (bf16 sublane packing), 128 lanes for D and C.
    b_pad = _round_up(B, 16)
    d_pad = _round_up(D, 128)
    c_pad = _round_up(C, 128)
    c_tile = _pick_c_tile(c_pad, c_tile)
    grid = (c_pad // c_tile,)

    # Embeddings (resident, bf16). Small relative to the proxy stream.
    if B == b_pad and D == d_pad:
        emb = embeddings.astype(jnp.bfloat16)
    else:
        emb = jnp.zeros((b_pad, d_pad), jnp.bfloat16).at[:B, :D].set(
            embeddings.astype(jnp.bfloat16))

    # Proxies (streamed over C, bf16). Avoid the pad copy when already aligned.
    if C == c_pad and D == d_pad:
        prox = proxies.astype(jnp.bfloat16)
    else:
        prox = jnp.zeros((c_pad, d_pad), jnp.bfloat16).at[:C, :D].set(
            proxies.astype(jnp.bfloat16))

    # Per-class inverse L2 norm, precomputed in f32 in the wrapper.
    # torch F.normalize clamps ||p|| to 1e-12  ->  clamp ||p||^2 to 1e-24.
    sq = jnp.sum(proxies.astype(jnp.float32) ** 2, axis=1)
    inv = jax.lax.rsqrt(jnp.maximum(sq, 1e-24))
    if C == c_pad:
        inv_norm = inv.reshape(1, c_pad)
    else:
        inv_norm = jnp.zeros((1, c_pad), jnp.float32).at[0, :C].set(inv)

    # Labels as an int32 column; padded rows get -1 (masked in-kernel).
    lab = jnp.full((b_pad, 1), -1, jnp.int32).at[:B, 0].set(
        labels.astype(jnp.int32))

    kernel = functools.partial(_proxy_anchor_kernel,
                               margin=float(margin), alpha=float(alpha),
                               n_classes=int(n_classes), c_tile=int(c_tile))

    cost = pl.CostEstimate(
        flops=2 * b_pad * c_pad * d_pad + 10 * b_pad * c_pad,
        transcendentals=b_pad * c_pad + 2 * c_pad,
        bytes_accessed=(2 * b_pad * d_pad        # bf16 embeddings
                        + 2 * c_pad * d_pad      # bf16 proxies
                        + 4 * c_pad              # f32 inv_norm
                        + 4 * b_pad              # int32 labels
                        + 3 * 4 * c_pad),        # three f32 per-class outputs
    )

    # VMEM budget: double-buffered bf16 proxy tiles + resident bf16 embeddings
    # + live (Bp, Ct) f32 temporaries + lane-dense outputs, clamped to 64 MiB
    # so the limit is valid on v7x as well as v5e/v6e.
    vmem_bytes = (2 * c_tile * d_pad * 2
                  + 2 * b_pad * d_pad * 2
                  + 2 * 4 * c_tile
                  + 2 * 3 * 4 * c_tile
                  + 8 * b_pad * c_tile * 4
                  + (2 << 20))
    vmem_limit = int(min(vmem_bytes, 64 << 20))

    out_shapes = (jax.ShapeDtypeStruct((1, c_pad), jnp.float32),   # log(1+sum_pos)
                  jax.ShapeDtypeStruct((1, c_pad), jnp.float32),   # log(1+sum_neg)
                  jax.ShapeDtypeStruct((1, c_pad), jnp.float32))   # class present

    log_pos, log_neg, present = pl.pallas_call(
        kernel,
        out_shape=out_shapes,
        grid=grid,
        in_specs=[
            pl.BlockSpec((b_pad, d_pad), lambda c: (0, 0)),   # embeddings (resident)
            pl.BlockSpec((c_tile, d_pad), lambda c: (c, 0)),  # proxies (streamed)
            pl.BlockSpec((1, c_tile), lambda c: (0, c)),      # inverse norms
            pl.BlockSpec((b_pad, 1), lambda c: (0, 0)),       # labels column (resident)
        ],
        out_specs=[
            pl.BlockSpec((1, c_tile), lambda c: (0, c)),
            pl.BlockSpec((1, c_tile), lambda c: (0, c)),
            pl.BlockSpec((1, c_tile), lambda c: (0, c)),
        ],
        compiler_params=pltpu.CompilerParams(
            dimension_semantics=("parallel",),
            vmem_limit_bytes=vmem_limit),
        cost_estimate=cost,
    )(emb, prox, inv_norm, lab)

    # Trivial final reductions in XLA (padded classes contribute zeros).
    pos_total = jnp.sum(log_pos)
    neg_total = jnp.sum(log_neg)
    n_distinct = jnp.sum(present)
    loss = pos_total / n_distinct + neg_total * (1.0 / float(n_classes))
    return loss, 0


def _reference(embeddings, proxies, labels, *, n_classes, margin, alpha):
    """Pure-JAX port of ProxyAnchorLoss.forward (two exps, f32 one-hot + where),
    mirroring the kernel's bf16 MXU operands and f32 output-side normalization
    so exp(alpha*.) amplification of operand rounding does not dominate."""
    inv_norm = jax.lax.rsqrt(jnp.maximum(jnp.sum(proxies * proxies, axis=1), 1e-24))
    cos = jnp.dot(embeddings.astype(jnp.bfloat16), proxies.astype(jnp.bfloat16).T,
                  preferred_element_type=jnp.float32) * inv_norm[None, :]
    pos_exp = jnp.exp(-alpha * (cos - margin))
    neg_exp = jnp.exp(alpha * (cos + margin))
    onehot = jax.nn.one_hot(labels, n_classes, dtype=jnp.float32)
    sum_pos = jnp.sum(jnp.where(onehot == 1.0, pos_exp, 0.0), axis=0)
    sum_neg = jnp.sum(jnp.where(onehot == 0.0, neg_exp, 0.0), axis=0)
    n_distinct = jnp.sum((jnp.sum(onehot, axis=0) != 0.0).astype(jnp.float32))
    return (jnp.sum(jnp.log(1.0 + sum_pos)) / n_distinct
            + jnp.sum(jnp.log(1.0 + sum_neg)) / n_classes)


if __name__ == "__main__":
    # Small, module-consistent shapes.
    B = 8            # batch
    D = 32           # embedding_size
    C = 16           # n_classes
    margin = 0.1
    alpha = 32.0

    key = jax.random.PRNGKey(0)
    k_emb, k_prox, k_lab = jax.random.split(key, 3)

    embeddings = jax.random.normal(k_emb, (B, D), dtype=jnp.float32)
    # Proxy-Anchor consumes L2-normalized embeddings in practice; normalizing
    # the test inputs keeps exp(alpha * cos) finite with alpha = 32.
    embeddings = embeddings / jnp.linalg.norm(embeddings, axis=1, keepdims=True)
    # Deterministic stand-in for nn.init.kaiming_normal_(mode='fan_out').
    proxies = jax.random.normal(k_prox, (C, D), dtype=jnp.float32) * jnp.sqrt(2.0 / C)
    labels = jax.random.randint(k_lab, (B,), 0, C, dtype=jnp.int32)

    loss, aux = proxy_anchor_loss(embeddings, proxies, labels,
                                  n_classes=C, margin=margin, alpha=alpha)
    loss = jax.block_until_ready(loss)

    ref = _reference(embeddings, proxies, labels,
                     n_classes=C, margin=margin, alpha=alpha)
    # bf16 operand rounding gets amplified through exp(alpha * .) before the
    # log, hence the few-permille tolerance.
    assert jnp.allclose(loss, ref, rtol=1e-2, atol=1e-3), (loss, ref)
    assert aux == 0

    print("KERNEL_OK")
</pallas_src>

<mosaic_0001>
module attributes {stable_mosaic.version = 11 : i64} {
  func.func @_proxy_anchor_kernel(%arg0: i32, %arg1: memref<16x128xbf16, #tpu.memory_space<vmem>>, %arg2: memref<128x128xbf16, #tpu.memory_space<vmem>>, %arg3: memref<1x128xf32, #tpu.memory_space<vmem>>, %arg4: memref<16x1xi32, #tpu.memory_space<vmem>>, %arg5: memref<1x128xf32, #tpu.memory_space<vmem>>, %arg6: memref<1x128xf32, #tpu.memory_space<vmem>>, %arg7: memref<1x128xf32, #tpu.memory_space<vmem>>) attributes {dimension_semantics = [#tpu.dimension_semantics<parallel>], iteration_bounds = array<i64: 1>, scalar_prefetch = 0 : i64, scratch_operands = 0 : i64, tpu.core_type = #tpu.core_type<tc>, window_params = [{pipeline_mode = #tpu.pipeline_mode<synchronous>, transform_indices = @transform_0, window_bounds = array<i64: 16, 128>}, {transform_indices = @transform_1, window_bounds = array<i64: 128, 128>}, {transform_indices = @transform_2, window_bounds = array<i64: 1, 128>}, {pipeline_mode = #tpu.pipeline_mode<synchronous>, transform_indices = @transform_3, window_bounds = array<i64: 16, 1>}, {transform_indices = @transform_4, window_bounds = array<i64: 1, 128>}, {transform_indices = @transform_5, window_bounds = array<i64: 1, 128>}, {transform_indices = @transform_6, window_bounds = array<i64: 1, 128>}]} {
    %c0 = arith.constant 0 : index
    %c0_0 = arith.constant 0 : index
    %0 = vector.load %arg1[%c0, %c0_0] : memref<16x128xbf16, #tpu.memory_space<vmem>>, vector<16x128xbf16>
    %c0_1 = arith.constant 0 : index
    %c0_2 = arith.constant 0 : index
    %1 = vector.load %arg2[%c0_1, %c0_2] : memref<128x128xbf16, #tpu.memory_space<vmem>>, vector<128x128xbf16>
    %cst = arith.constant dense<0.000000e+00> : vector<16x128xf32>
    %2 = tpu.matmul %0, %1, %cst {dimension_numbers = #tpu.dot_dimension_numbers<[1], [1], [0], [0], [0, 0, 1, 0], [], []>} : vector<16x128xbf16>, vector<128x128xbf16>, vector<16x128xf32> -> vector<16x128xf32>
    %c0_3 = arith.constant 0 : index
    %c0_4 = arith.constant 0 : index
    %3 = vector.load %arg3[%c0_3, %c0_4] : memref<1x128xf32, #tpu.memory_space<vmem>>, vector<1x128xf32>
    %4 = vector.broadcast %3 : vector<1x128xf32> to vector<16x128xf32>
    %5 = arith.mulf %2, %4 : vector<16x128xf32>
    %c0_5 = arith.constant 0 : index
    %c0_6 = arith.constant 0 : index
    %6 = vector.load %arg4[%c0_5, %c0_6] : memref<16x1xi32, #tpu.memory_space<vmem>>, vector<16x1xi32>
    %c128_i32 = arith.constant 128 : i32
    %7 = arith.muli %arg0, %c128_i32 : i32
    %8 = tpu.iota {dimensions = array<i32: 1>} : vector<1x128xi32>
    %9 = vector.broadcast %7 : i32 to vector<1x128xi32>
    %10 = arith.addi %9, %8 : vector<1x128xi32>
    %11 = vector.broadcast %10 : vector<1x128xi32> to vector<16x128xi32>
    %12 = vector.broadcast %6 : vector<16x1xi32> to vector<16x128xi32>
    %13 = arith.cmpi eq, %11, %12 : vector<16x128xi32>
    %c16_i32 = arith.constant 16 : i32
    %14 = vector.broadcast %c16_i32 : i32 to vector<1x128xi32>
    %15 = arith.cmpi slt, %10, %14 : vector<1x128xi32>
    %c0_i32 = arith.constant 0 : i32
    %16 = vector.broadcast %c0_i32 : i32 to vector<16x1xi32>
    %17 = arith.cmpi sge, %6, %16 : vector<16x1xi32>
    %18 = vector.broadcast %15 : vector<1x128xi1> to vector<16x128xi1>
    %19 = vector.broadcast %17 : vector<16x1xi1> to vector<16x128xi1>
    %20 = arith.andi %18, %19 : vector<16x128xi1>
    %21 = arith.extui %13 : vector<16x128xi1> to vector<16x128xi32>
    %22 = arith.sitofp %21 : vector<16x128xi32> to vector<16x128xf32>
    %cst_7 = arith.constant dense<true> : vector<16x128xi1>
    %23 = arith.xori %13, %cst_7 : vector<16x128xi1>
    %24 = arith.andi %20, %23 : vector<16x128xi1>
    %25 = arith.extui %24 : vector<16x128xi1> to vector<16x128xi32>
    %26 = arith.sitofp %25 : vector<16x128xi32> to vector<16x128xf32>
    %cst_8 = arith.constant 2.000000e+00 : f32
    %27 = vector.broadcast %cst_8 : f32 to vector<16x128xf32>
    %28 = arith.mulf %27, %22 : vector<16x128xf32>
    %cst_9 = arith.constant 1.000000e+00 : f32
    %29 = vector.broadcast %cst_9 : f32 to vector<16x128xf32>
    %30 = arith.subf %29, %28 : vector<16x128xf32>
    %cst_10 = arith.constant 3.200000e+01 : f32
    %31 = vector.broadcast %cst_10 : f32 to vector<16x128xf32>
    %32 = arith.mulf %31, %5 : vector<16x128xf32>
    %33 = arith.mulf %30, %32 : vector<16x128xf32>
    %cst_11 = arith.constant 3.200000e+00 : f32
    %34 = vector.broadcast %cst_11 : f32 to vector<16x128xf32>
    %35 = arith.addf %34, %33 : vector<16x128xf32>
    %36 = math.exp %35 : vector<16x128xf32>
    %37 = arith.mulf %22, %36 : vector<16x128xf32>
    %cst_12 = arith.constant dense<0.000000e+00> : vector<128xf32>
    %38 = vector.multi_reduction <add>, %37, %cst_12 [0] : vector<16x128xf32> to vector<128xf32>
    %39 = vector.shape_cast %38 : vector<128xf32> to vector<1x128xf32>
    %40 = arith.mulf %26, %36 : vector<16x128xf32>
    %cst_13 = arith.constant dense<0.000000e+00> : vector<128xf32>
    %41 = vector.multi_reduction <add>, %40, %cst_13 [0] : vector<16x128xf32> to vector<128xf32>
    %42 = vector.shape_cast %41 : vector<128xf32> to vector<1x128xf32>
    %cst_14 = arith.constant 1.000000e+00 : f32
    %43 = vector.broadcast %cst_14 : f32 to vector<1x128xf32>
    %44 = arith.addf %43, %39 : vector<1x128xf32>
    %45 = math.log %44 : vector<1x128xf32>
    %c0_15 = arith.constant 0 : index
    %c0_16 = arith.constant 0 : index
    %46 = vector.load %arg5[%c0_15, %c0_16] : memref<1x128xf32, #tpu.memory_space<vmem>>, vector<1x128xf32>
    tpu.vector_store %arg5[%c0_15, %c0_16], %45 {strides = array<i32>} : memref<1x128xf32, #tpu.memory_space<vmem>>, vector<1x128xf32>,
    %cst_17 = arith.constant 1.000000e+00 : f32
    %47 = vector.broadcast %cst_17 : f32 to vector<1x128xf32>
    %48 = arith.addf %47, %42 : vector<1x128xf32>
    %49 = math.log %48 : vector<1x128xf32>
    %c0_18 = arith.constant 0 : index
    %c0_19 = arith.constant 0 : index
    %50 = vector.load %arg6[%c0_18, %c0_19] : memref<1x128xf32, #tpu.memory_space<vmem>>, vector<1x128xf32>
    tpu.vector_store %arg6[%c0_18, %c0_19], %49 {strides = array<i32>} : memref<1x128xf32, #tpu.memory_space<vmem>>, vector<1x128xf32>,
    %cst_20 = arith.constant 0.000000e+00 : f32
    %51 = vector.broadcast %cst_20 : f32 to vector<1x128xf32>
    %52 = arith.cmpf ogt, %39, %51 : vector<1x128xf32>
    %53 = arith.extui %52 : vector<1x128xi1> to vector<1x128xi32>
    %54 = arith.sitofp %53 : vector<1x128xi32> to vector<1x128xf32>
    %c0_21 = arith.constant 0 : index
    %c0_22 = arith.constant 0 : index
    %55 = vector.load %arg7[%c0_21, %c0_22] : memref<1x128xf32, #tpu.memory_space<vmem>>, vector<1x128xf32>
    tpu.vector_store %arg7[%c0_21, %c0_22], %54 {strides = array<i32>} : memref<1x128xf32, #tpu.memory_space<vmem>>, vector<1x128xf32>,
    return
  }
  func.func @transform_0(%arg0: i32) -> (i32, i32) {
    %c0_i32 = arith.constant 0 : i32
    %c0_i32_0 = arith.constant 0 : i32
    %c0_i32_1 = arith.constant 0 : i32
    return %c0_i32, %c0_i32_0 : i32, i32
  }
  func.func @transform_1(%arg0: i32) -> (i32, i32) {
    %c0_i32 = arith.constant 0 : i32
    %c0_i32_0 = arith.constant 0 : i32
    return %arg0, %c0_i32 : i32, i32
  }
  func.func @transform_2(%arg0: i32) -> (i32, i32) {
    %c0_i32 = arith.constant 0 : i32
    %c0_i32_0 = arith.constant 0 : i32
    return %c0_i32, %arg0 : i32, i32
  }
  func.func @transform_3(%arg0: i32) -> (i32, i32) {
    %c0_i32 = arith.constant 0 : i32
    %c0_i32_0 = arith.constant 0 : i32
    %c0_i32_1 = arith.constant 0 : i32
    return %c0_i32, %c0_i32_0 : i32, i32
  }
  func.func @transform_4(%arg0: i32) -> (i32, i32) {
    %c0_i32 = arith.constant 0 : i32
    %c0_i32_0 = arith.constant 0 : i32
    return %c0_i32, %arg0 : i32, i32
  }
  func.func @transform_5(%arg0: i32) -> (i32, i32) {
    %c0_i32 = arith.constant 0 : i32
    %c0_i32_0 = arith.constant 0 : i32
    return %c0_i32, %arg0 : i32, i32
  }
  func.func @transform_6(%arg0: i32) -> (i32, i32) {
    %c0_i32 = arith.constant 0 : i32
    %c0_i32_0 = arith.constant 0 : i32
    return %c0_i32, %arg0 : i32, i32
  }
}

</mosaic_0001>

<llo_original>
// kernel: tpu_custom_call.1
$region0: #{tpu_custom_call.1}
  #allocation0 [shape = 'u32[]', space=smem, size = 0x4, offset = 0x4, fixed_abs, tag = 'smem constant byte address 0x4 - core index']
  #allocation1 [shape = 'u32[72,128]{1,0:T(1,128)}', space=vmem, size = 0x9000, scoped, tag = 'internal scratch']
  %s0 = inlined_call_operand.vmem [shape: bf16[16,128], index: 0, kind: input, shape index: {}]
  %s1 = inlined_call_operand.hbm [shape: bf16[128,128], index: 1, kind: input, shape index: {}]
  %s2 = inlined_call_operand.vmem [shape: f32[1,128], index: 2, kind: input, shape index: {}]
  %s3 = inlined_call_operand.vmem [shape: s32[16,1], index: 3, kind: input, shape index: {}]
  %s4 = inlined_call_operand.hbm [shape: f32[1,128], index: 4, kind: output, shape index: {0}]
  %s5 = inlined_call_operand.hbm [shape: f32[1,128], index: 5, kind: output, shape index: {1}]
  %s6 = inlined_call_operand.hbm [shape: f32[1,128], index: 6, kind: output, shape index: {2}]
  %7 = xla_tuple %s4, %s5, %s6
  %s8 = sld [smem:[#allocation0]]
  $region46: #{tpu_custom_call.1} parent=0
    _
  %s10 = ssub.s32 1, %s8
  %s11 = scalar_select 0, %s10, %s8
  $region1: #{tpu_custom_call.1} parent=0
    #allocation2 [shape = 'u8[32768]{0}', space=vmem, size = 0x8000, scoped, tag = 'input window, operand 1, single buffered']
    #allocation3 [shape = 's32[1]{0}', space=sflag, size = 0x4, scoped, tag = 'scoped memory for tpu_custom_call.1']
    #allocation4 [shape = 's32[1]{0}', space=sflag, size = 0x4, scoped, tag = 'scoped memory for tpu_custom_call.1']
    #allocation5 [shape = 'u8[512]{0}', space=vmem, size = 0x400, scoped, tag = 'output window, operand 0, single buffered']
    #allocation6 [shape = 'u8[512]{0}', space=vmem, size = 0x400, scoped, tag = 'output window, operand 1, single buffered']
    #allocation7 [shape = 's32[1]{0}', space=sflag, size = 0x4, scoped, tag = 'scoped memory for tpu_custom_call.1']
    #allocation8 [shape = 'u8[512]{0}', space=vmem, size = 0x400, scoped, tag = 'output window, operand 2, single buffered']
    %12 = vsyncpa [#allocation3], 0
    %13 = vsyncpa [#allocation4], 0
    %14 = vsyncpa [#allocation7], 0
    // Predicated region
    $region2: #{tpu_custom_call.1} parent=1 // pred_check
      _
    $region3: #{tpu_custom_call.1} parent=1 // pred_check_branch
      %16 = sbr.rel (0) target = $region5
    $region4: #{tpu_custom_call.1} parent=1 // pred_region
      _
    $region5: #{tpu_custom_call.1} parent=1 // pred_fallthru
      _
    // Predicated region
    $region6: #{tpu_custom_call.1} parent=1 // pred_check
      _
    $region7: #{tpu_custom_call.1} parent=1 // pred_check_branch
      %18 = sbr.rel (0) target = $region9
    $region8: #{tpu_custom_call.1} parent=1 // pred_region
      %20 = vsyncadd [#allocation3], 0
      %s21 = sshll.u32 %s1, 4
      %s22 = int_to_ptr.hbm [resolvable:$true] %s21
      %s23 = sshll.u32 [#allocation2], 4
      %s24 = int_to_ptr.vmem [resolvable:$true] %s23
      %29 = dma.hbm_to_vmem [thread:$0]  %s22, 1024, %s24, [#allocation3], 64, 64, 4
    $region9: #{tpu_custom_call.1} parent=1 // pred_fallthru
      _
    // Predicated region
    $region10: #{tpu_custom_call.1} parent=1 // pred_check
      _
    $region11: #{tpu_custom_call.1} parent=1 // pred_check_branch
      %31 = sbr.rel (0) target = $region13
    $region12: #{tpu_custom_call.1} parent=1 // pred_region
      _
    $region13: #{tpu_custom_call.1} parent=1 // pred_fallthru
      _
    // Predicated region
    $region14: #{tpu_custom_call.1} parent=1 // pred_check
      _
    $region15: #{tpu_custom_call.1} parent=1 // pred_check_branch
      %33 = sbr.rel (0) target = $region17
    $region16: #{tpu_custom_call.1} parent=1 // pred_region
      _
    $region17: #{tpu_custom_call.1} parent=1 // pred_fallthru
      _
    // Predicated region
    $region18: #{tpu_custom_call.1} parent=1 // pred_check
      _
    $region19: #{tpu_custom_call.1} parent=1 // pred_check_branch
      %35 = sbr.rel (0) target = $region21
    $region20: #{tpu_custom_call.1} parent=1 // pred_region
      %37 = dma.done [#allocation3], 1024
    $region21: #{tpu_custom_call.1} parent=1 // pred_fallthru
      _
    %v38 = vld [vmem:[%s0] sm:$0xf]
    %v39 = vld [vmem:[%s0 + $0x4] sm:$0xf]
    %v40 = vld [vmem:[#allocation2] sm:$0xf]
    %v41 = vld [vmem:[#allocation2 + $0x4] sm:$0xf]
    %v42 = vld [vmem:[#allocation2 + $0x8] sm:$0xf]
    %v43 = vld [vmem:[#allocation2 + $0xc] sm:$0xf]
    %v44 = vld [vmem:[#allocation2 + $0x10] sm:$0xf]
    %v45 = vld [vmem:[#allocation2 + $0x14] sm:$0xf]
    %v46 = vld [vmem:[#allocation2 + $0x18] sm:$0xf]
    %v47 = vld [vmem:[#allocation2 + $0x1c] sm:$0xf]
    %v48 = vld [vmem:[#allocation2 + $0x20] sm:$0xf]
    %v49 = vld [vmem:[#allocation2 + $0x24] sm:$0xf]
    %v50 = vld [vmem:[#allocation2 + $0x28] sm:$0xf]
    %v51 = vld [vmem:[#allocation2 + $0x2c] sm:$0xf]
    %v52 = vld [vmem:[#allocation2 + $0x30] sm:$0xf]
    %v53 = vld [vmem:[#allocation2 + $0x34] sm:$0xf]
    %v54 = vld [vmem:[#allocation2 + $0x38] sm:$0xf]
    %v55 = vld [vmem:[#allocation2 + $0x3c] sm:$0xf]
    %v58 = vunpack.c.l.b16 %v38
    %v59 = vunpack.c.l.b16 %v39
    %v60 = vpack.c.b16 %v59, %v58
    %v78 = vunpack.c.l.b16 %v40
    %v79 = vunpack.c.l.b16 %v41
    %v80 = vunpack.c.l.b16 %v42
    %v81 = vunpack.c.l.b16 %v43
    %v82 = vunpack.c.l.b16 %v44
    %v83 = vunpack.c.l.b16 %v45
    %v84 = vunpack.c.l.b16 %v46
    %v85 = vunpack.c.l.b16 %v47
    %v86 = vunpack.c.l.b16 %v48
    %v87 = vunpack.c.l.b16 %v49
    %v88 = vunpack.c.l.b16 %v50
    %v89 = vunpack.c.l.b16 %v51
    %v90 = vunpack.c.l.b16 %v52
    %v91 = vunpack.c.l.b16 %v53
    %v92 = vunpack.c.l.b16 %v54
    %v93 = vunpack.c.l.b16 %v55
    %v94 = vpack.c.b16 %v79, %v78
    %v95 = vpack.c.b16 %v81, %v80
    %v96 = vpack.c.b16 %v83, %v82
    %v97 = vpack.c.b16 %v85, %v84
    %v98 = vpack.c.b16 %v87, %v86
    %v99 = vpack.c.b16 %v89, %v88
    %v100 = vpack.c.b16 %v91, %v90
    %v101 = vpack.c.b16 %v93, %v92
    %110 = vmatpush.bf16.xpose.msra.mxu0 %v101
    %111 = vmatpush.bf16.xpose.msra.mxu0 %v100
    %112 = vmatpush.bf16.xpose.msra.mxu0 %v99
    %113 = vmatpush.bf16.xpose.msra.mxu0 %v98
    %114 = vmatpush.bf16.xpose.msra.mxu0 %v97
    %115 = vmatpush.bf16.xpose.msra.mxu0 %v96
    %116 = vmatpush.bf16.xpose.msra.mxu0 %v95
    %117 = vmatpush.bf16.xpose.msra.mxu0 %v94
    %118 = vmatmul.bf16.gmra.mxu0 %v60
    %v119 = vpop.f32.mrf.mxu0
    %v120 = vadd.f32 0.0, %v119
    %v121 = vpop.f32.mrf.mxu0
    %v122 = vadd.f32 0.0, %v121
    %123 = vdwg.mxu0
    %v124 = vld [vmem:[%s2] sm:$0x1]
    %v126 = vperm.slane %v124, 0
    %v128 = vmul.f32 %v120, %v126
    %v129 = vmul.f32 %v122, %v126
    %v130 = vld [vmem:[%s3] sm:$0xff]
    %v131 = vld [vmem:[%s3 + $0x8] sm:$0xff]
    %s132 = smul.u32 0, 128
    %v133 = vlaneseq
    %v134 = vand.u32 %v133, 127
    %v135 = vstv %s132
    %v136 = vadd.s32 %v135, %v134
    %137 = vset.pattern.permute.xlu0 0
    %138 = vperm.xlu0 %137, %v130
    %v139 = vpop.permute.xlu0 %138
    %140 = vset.pattern.permute.xlu0 0
    %141 = vperm.xlu0 %140, %v131
    %v142 = vpop.permute.xlu0 %141
    %vm143 = vcmp.eq.s32.totalorder %v136, %v139
    %vm144 = vcmp.eq.s32.totalorder %v136, %v142
    %vm145 = vcmp.lt.s32.totalorder %v136, 16
    %vm146 = vcmp.ge.s32.totalorder %v130, 0
    %vm147 = vcmp.ge.s32.totalorder %v131, 0
    %v148 = vsel %vm145, 1, 0
    %vm149 = vcmp.eq.s32.totalorder %v148, 1
    %v150 = vsel %vm146, 1, 0
    %v151 = vsel %vm147, 1, 0
    %152 = vset.pattern.permute.xlu0 0
    %153 = vperm.xlu0 %152, %v150
    %v154 = vpop.permute.xlu0 %153
    %155 = vset.pattern.permute.xlu0 0
    %156 = vperm.xlu0 %155, %v151
    %v157 = vpop.permute.xlu0 %156
    %vm158 = vcmp.eq.s32.totalorder %v154, 1
    %vm159 = vcmp.eq.s32.totalorder %v157, 1
    %vm160 = vmand %vm149, %vm158
    %vm161 = vmand %vm149, %vm159
    %v162 = vsel %vm143, 1, 0
    %v163 = vsel %vm144, 1, 0
    %v164 = vcvt.s32.f32 %v162
    %v165 = vcvt.s32.f32 %v163
    %vm166 = vmxor %vm143, 1
    %vm167 = vmxor %vm144, 1
    %vm168 = vmand %vm160, %vm166
    %vm169 = vmand %vm161, %vm167
    %v170 = vsel %vm168, 1, 0
    %v171 = vsel %vm169, 1, 0
    %v172 = vcvt.s32.f32 %v170
    %v173 = vcvt.s32.f32 %v171
    %v174 = vmul.f32 %v164, 2.0
    %v175 = vmul.f32 %v165, 2.0
    %v176 = vsub.f32 1.0, %v174
    %v177 = vsub.f32 1.0, %v175
    %v178 = vmul.f32 %v128, 32.0
    %v179 = vmul.f32 %v129, 32.0
    %v180 = vmul.f32 %v176, %v178
    %v181 = vmul.f32 %v177, %v179
    %v182 = vadd.f32 %v180, 3.2
    %v183 = vadd.f32 %v181, 3.2
    %v184 = vmul.f32 %v182, 1.442695
    %v185 = vpow.pop %v184
    %v186 = vmul.f32 %v183, 1.442695
    %v187 = vpow.pop %v186
    %v188 = vmul.f32 %v164, %v185
    %v189 = vmul.f32 %v165, %v187
    %v190 = vadd.f32 %v188, %v189
    %v191 = vrot.slane %v190, 4
    %v192 = vadd.f32 %v190, %v191
    %v193 = vrot.slane %v192, 2
    %v194 = vadd.f32 %v192, %v193
    %v195 = vrot.slane %v194, 1
    %v196 = vadd.f32 %v194, %v195
    %v197 = vmul.f32 %v172, %v185
    %v198 = vmul.f32 %v173, %v187
    %v199 = vadd.f32 %v197, %v198
    %v200 = vrot.slane %v199, 4
    %v201 = vadd.f32 %v199, %v200
    %v202 = vrot.slane %v201, 2
    %v203 = vadd.f32 %v201, %v202
    %v204 = vrot.slane %v203, 1
    %v205 = vadd.f32 %v203, %v204
    %v206 = vadd.f32 %v196, 1.0
    %v207 = vlog2.pop %v206
    %v208 = vmul.f32 %v207, 0.6931472
    %209 = vst [vmem:[#allocation5] sm:$0x1] %v208
    %v210 = vadd.f32 %v205, 1.0
    %v211 = vlog2.pop %v210
    %v212 = vmul.f32 %v211, 0.6931472
    %213 = vst [vmem:[#allocation6] sm:$0x1] %v212
    %vm214 = vcmp.gt.f32.partialorder %v196, 0.0
    %v215 = vsel %vm214, 1, 0
    %v216 = vcvt.s32.f32 %v215
    %217 = vst [vmem:[#allocation8] sm:$0x1] %v216
    // Predicated region
    $region22: #{tpu_custom_call.1} parent=1 // pred_check
      _
    $region23: #{tpu_custom_call.1} parent=1 // pred_check_branch
      %219 = sbr.rel (0) target = $region25
    $region24: #{tpu_custom_call.1} parent=1 // pred_region
      %221 = vsyncadd [#allocation4], 0
      %s223 = sshll.u32 [#allocation5], 4
      %s224 = int_to_ptr.vmem [resolvable:$true] %s223
      %s225 = sshll.u32 %s4, 4
      %s226 = int_to_ptr.hbm [resolvable:$true] %s225
      %228 = dma.vmem_to_hbm [thread:$0]  %s224, 16, %s226, [#allocation4]
    $region25: #{tpu_custom_call.1} parent=1 // pred_fallthru
      _
    // Predicated region
    $region26: #{tpu_custom_call.1} parent=1 // pred_check
      _
    $region27: #{tpu_custom_call.1} parent=1 // pred_check_branch
      %230 = sbr.rel (0) target = $region29
    $region28: #{tpu_custom_call.1} parent=1 // pred_region
      %232 = vsyncadd [#allocation7], 0
      %s234 = sshll.u32 [#allocation6], 4
      %s235 = int_to_ptr.vmem [resolvable:$true] %s234
      %s236 = sshll.u32 %s5, 4
      %s237 = int_to_ptr.hbm [resolvable:$true] %s236
      %239 = dma.vmem_to_hbm [thread:$0]  %s235, 16, %s237, [#allocation7]
    $region29: #{tpu_custom_call.1} parent=1 // pred_fallthru
      _
    // Predicated region
    $region30: #{tpu_custom_call.1} parent=1 // pred_check
      _
    $region31: #{tpu_custom_call.1} parent=1 // pred_check_branch
      %241 = sbr.rel (0) target = $region33
    $region32: #{tpu_custom_call.1} parent=1 // pred_region
      %243 = vsyncadd [#allocation7], 0
      %s245 = sshll.u32 [#allocation8], 4
      %s246 = int_to_ptr.vmem [resolvable:$true] %s245
      %s247 = sshll.u32 %s6, 4
      %s248 = int_to_ptr.hbm [resolvable:$true] %s247
      %250 = dma.vmem_to_hbm [thread:$0]  %s246, 16, %s248, [#allocation7]
    $region33: #{tpu_custom_call.1} parent=1 // pred_fallthru
      _
    // Predicated region
    $region34: #{tpu_custom_call.1} parent=1 // pred_check
      _
    $region35: #{tpu_custom_call.1} parent=1 // pred_check_branch
      %252 = sbr.rel (0) target = $region37
    $region36: #{tpu_custom_call.1} parent=1 // pred_region
      %254 = dma.done [#allocation4], 16
    $region37: #{tpu_custom_call.1} parent=1 // pred_fallthru
      _
    // Predicated region
    $region38: #{tpu_custom_call.1} parent=1 // pred_check
      _
    $region39: #{tpu_custom_call.1} parent=1 // pred_check_branch
      %256 = sbr.rel (0) target = $region41
    $region40: #{tpu_custom_call.1} parent=1 // pred_region
      %258 = dma.done [#allocation7], 16
    $region41: #{tpu_custom_call.1} parent=1 // pred_fallthru
      _
    // Predicated region
    $region42: #{tpu_custom_call.1} parent=1 // pred_check
      _
    $region43: #{tpu_custom_call.1} parent=1 // pred_check_branch
      %260 = sbr.rel (0) target = $region45
    $region44: #{tpu_custom_call.1} parent=1 // pred_region
      %262 = dma.done [#allocation7], 16
    $region45: #{tpu_custom_call.1} parent=1 // pred_fallthru
      _
    %263 = vsyncpa [#allocation3], 1
    %264 = vsyncpa [#allocation4], 1
    %265 = vsyncpa [#allocation7], 1

</llo_original>
